<compile_context>
chip_gen: v5e
topology: v5e:2x2
jax: 0.10.0
libtpu: 0.0.40
codegen_flags: <defaults>
</compile_context>

<pallas_src>
import functools

import numpy as np
import jax
import jax.numpy as jnp
from jax import lax
from jax.experimental import pallas as pl
from jax.experimental.pallas import tpu as pltpu

_BN_EPS = 1e-5


def _round_up(n, m):
    return (n + m - 1) // m * m


# ----------------------------------------------------------------------------
# Pallas kernel: the whole DCF_M forward (both signals, both blocks) in one shot.
# ----------------------------------------------------------------------------
def _dcf_kernel(x_ref, wsq_ref, w2_ref, sh_ref, o1_ref, o2_ref, *,
                bcp, seq_len, lp):
    """Shapes (Lp = padded seq_len = `lp`, bcp = padded 2*batch*channels):
      x_ref   : (bcp, Lp)        activations; rows = [signal, batch, channel]
      wsq_ref : (4, bcp, bcp)    [2k]=conv1, [2k+1]=conv3 block-diag, BN-scaled
      w2_ref  : (2, 3*bcp, bcp)  stacked k=3 tap weights of block k, BN-scaled
      sh_ref  : (6, bcp, 1)      folded BN shift (conv bias absorbed), 3k+j
    """
    # Lane masks for the k=3 conv zero-padding (and to keep the roll wrap-around
    # and the padded lanes from leaking into real columns).
    col = lax.broadcasted_iota(jnp.int32, (1, lp), 1)
    prev_mask = ((col >= 1) & (col < seq_len)).astype(jnp.float32)
    next_mask = (col < seq_len - 1).astype(jnp.float32)

    def bottleneck(k, xin):
        # ---- conv1 (k=1) + folded BN + ReLU ---------------------------------
        h1 = jnp.dot(wsq_ref[2 * k], xin, preferred_element_type=jnp.float32)
        h1 = jnp.maximum(h1 + sh_ref[3 * k], 0.0)

        # ---- conv2 (k=3, pad=1): one stacked matmul for all 3 taps ----------
        taps = jnp.dot(w2_ref[k], h1, preferred_element_type=jnp.float32)
        t_prev = taps[0 * bcp:1 * bcp, :]   # needs h1[:, l-1]
        t_mid = taps[1 * bcp:2 * bcp, :]    # h1[:, l]
        t_next = taps[2 * bcp:3 * bcp, :]   # needs h1[:, l+1]
        # roll(+1): out[:, l] = t_prev[:, l-1];  roll(lp-1) == roll(-1):
        # out[:, l] = t_next[:, l+1].  Masks supply the conv zero-padding.
        h2 = (pltpu.roll(t_prev, 1, 1) * prev_mask
              + t_mid
              + pltpu.roll(t_next, lp - 1, 1) * next_mask)
        h2 = jnp.maximum(h2 + sh_ref[3 * k + 1], 0.0)

        # ---- conv3 (k=1) + folded BN, residual, ReLU ------------------------
        h3 = jnp.dot(wsq_ref[2 * k + 1], h2, preferred_element_type=jnp.float32)
        h3 = h3 + sh_ref[3 * k + 2]
        return jnp.maximum(h3 + xin, 0.0)

    y1 = bottleneck(0, x_ref[...])
    o1_ref[...] = y1
    o2_ref[...] = bottleneck(1, y1)


# ----------------------------------------------------------------------------
# One-time parameter packing (plain numpy, OUT of the jitted per-call path).
# ----------------------------------------------------------------------------
def init_bottleneck_params(key, c):
    """Deterministic synthetic parameters for one Bottleneck1D_M block."""
    ks = jax.random.split(key, 18)

    def conv_w(k, shape, fan_in):
        bound = 1.0 / np.sqrt(fan_in)
        return jax.random.uniform(k, shape, jnp.float32, -bound, bound)

    def bn(k0, k1, k2, k3):
        return dict(
            gamma=jax.random.uniform(k0, (c,), jnp.float32, 0.5, 1.5),
            beta=jax.random.uniform(k1, (c,), jnp.float32, -0.5, 0.5),
            mean=jax.random.uniform(k2, (c,), jnp.float32, -0.2, 0.2),
            var=jax.random.uniform(k3, (c,), jnp.float32, 0.5, 1.5),
        )

    return dict(
        w1=conv_w(ks[0], (c, c), c), b1=conv_w(ks[1], (c,), c),
        w2=conv_w(ks[2], (c, c, 3), c * 3), b2=conv_w(ks[3], (c,), c * 3),
        w3=conv_w(ks[4], (c, c), c), b3=conv_w(ks[5], (c,), c),
        bn1=bn(ks[6], ks[7], ks[8], ks[9]),
        bn2=bn(ks[10], ks[11], ks[12], ks[13]),
        bn3=bn(ks[14], ks[15], ks[16], ks[17]),
    )


def _block_diag(mats, bcp):
    """Block-diagonal of the (c,c) matrices in `mats`, zero-padded to (bcp,bcp)."""
    c = mats[0].shape[0]
    out = np.zeros((bcp, bcp), np.float32)
    for i, m in enumerate(mats):
        out[i * c:(i + 1) * c, i * c:(i + 1) * c] = m
    return out


def _tile(vecs, bcp):
    v = np.concatenate(vecs)
    out = np.zeros((bcp,), np.float32)
    out[:v.shape[0]] = v
    return out


def pack_dcf_params(params, batch):
    """Pack the 4 encoders into 3 arrays.  Fused row ordering:
    [signal(I,V), batch, channel].  BN scale is folded into the weights,
    BN shift (with conv bias) into per-row additive vectors."""
    blocks = [("EncoderI1", "EncoderV1"), ("EncoderI2", "EncoderV2")]
    c = np.asarray(params["EncoderI1"]["w1"]).shape[0]
    bcp = _round_up(2 * batch * c, 8)

    def fold(p):
        """Returns [(scaled_w, shift)] for conv1, conv2(k=3), conv3."""
        out = []
        for w, b, bn in ((p["w1"], p["b1"], p["bn1"]),
                         (p["w2"], p["b2"], p["bn2"]),
                         (p["w3"], p["b3"], p["bn3"])):
            scale = (np.asarray(bn["gamma"], np.float64)
                     / np.sqrt(np.asarray(bn["var"], np.float64) + _BN_EPS))
            shift = scale * (np.asarray(b, np.float64)
                             - np.asarray(bn["mean"], np.float64)) \
                + np.asarray(bn["beta"], np.float64)
            w = np.asarray(w, np.float64)
            w = w * (scale[:, None, None] if w.ndim == 3 else scale[:, None])
            out.append((w.astype(np.float32), shift.astype(np.float32)))
        return out

    wsq, w2s, shs = [], [], []
    for name_i, name_v in blocks:
        fi, fv = fold(params[name_i]), fold(params[name_v])

        def mats(j):   # per-row-group weights, order [I]*B + [V]*B
            return [fi[j][0]] * batch + [fv[j][0]] * batch

        def shifts(j):
            return [fi[j][1]] * batch + [fv[j][1]] * batch

        wsq.append(_block_diag(mats(0), bcp))                      # conv1
        wsq.append(_block_diag(mats(2), bcp))                      # conv3
        w2s.append(np.concatenate(
            [_block_diag([m[:, :, t] for m in mats(1)], bcp) for t in range(3)],
            axis=0))                                               # (3*bcp, bcp)
        for j in range(3):
            shs.append(_tile(shifts(j), bcp))

    return (jnp.asarray(np.stack(wsq)),                # (4, bcp, bcp)
            jnp.asarray(np.stack(w2s)),                # (2, 3*bcp, bcp)
            jnp.asarray(np.stack(shs)[:, :, None]))    # (6, bcp, 1)


# ----------------------------------------------------------------------------
# Forward wrapper (single pallas_call, single grid step for the whole module)
# ----------------------------------------------------------------------------
@jax.jit
def dcf_m_forward(current, voltage, wsq, w2, sh):
    """DCF_M.forward: inputs NCL; returns (current1, voltage1, current2, voltage2)."""
    B, C, L = current.shape
    bc2 = 2 * B * C
    bcp = wsq.shape[1]
    lp = _round_up(L, 128)

    # (2,B,C,L) -> (2*B*C, L) -> pad to (bcp, lp); reshape only, no transpose.
    x = jnp.stack([current, voltage]).reshape(bc2, L).astype(jnp.float32)
    x = jnp.pad(x, ((0, bcp - bc2), (0, lp - L)))

    kernel = functools.partial(_dcf_kernel, bcp=bcp, seq_len=L, lp=lp)
    o1, o2 = pl.pallas_call(
        kernel,
        out_shape=(jax.ShapeDtypeStruct((bcp, lp), jnp.float32),
                   jax.ShapeDtypeStruct((bcp, lp), jnp.float32)),
        grid_spec=pltpu.PrefetchScalarGridSpec(
            num_scalar_prefetch=0,
            grid=(1,),  # whole module = one step (overhead floor on v5e/v6e/v7x)
            in_specs=[
                pl.BlockSpec((bcp, lp), lambda i: (0, 0)),
                pl.BlockSpec((4, bcp, bcp), lambda i: (0, 0, 0)),
                pl.BlockSpec((2, 3 * bcp, bcp), lambda i: (0, 0, 0)),
                pl.BlockSpec((6, bcp, 1), lambda i: (0, 0, 0)),
            ],
            out_specs=[pl.BlockSpec((bcp, lp), lambda i: (0, 0)),
                       pl.BlockSpec((bcp, lp), lambda i: (0, 0))],
        ),
        compiler_params=pltpu.CompilerParams(dimension_semantics=("arbitrary",)),
    )(x, wsq, w2, sh)

    y1 = o1[:bc2, :L].reshape(2, B, C, L)
    y2 = o2[:bc2, :L].reshape(2, B, C, L)
    return y1[0], y1[1], y2[0], y2[1]


# ----------------------------------------------------------------------------
# Pure-JAX reference (NCL layout, mirrors the PyTorch ops)
# ----------------------------------------------------------------------------
def _bn_ref(y, bnp):
    g, b, m, v = bnp["gamma"], bnp["beta"], bnp["mean"], bnp["var"]
    return (g[None, :, None] * (y - m[None, :, None])
            / jnp.sqrt(v[None, :, None] + _BN_EPS) + b[None, :, None])


def bottleneck1d_ref(x, p):
    h1 = jnp.einsum("oi,bil->bol", p["w1"], x) + p["b1"][None, :, None]
    h1 = jax.nn.relu(_bn_ref(h1, p["bn1"]))
    xp = jnp.pad(h1, ((0, 0), (0, 0), (1, 1)))
    h2 = (jnp.einsum("oi,bil->bol", p["w2"][:, :, 0], xp[:, :, :-2])
          + jnp.einsum("oi,bil->bol", p["w2"][:, :, 1], xp[:, :, 1:-1])
          + jnp.einsum("oi,bil->bol", p["w2"][:, :, 2], xp[:, :, 2:])
          + p["b2"][None, :, None])
    h2 = jax.nn.relu(_bn_ref(h2, p["bn2"]))
    h3 = jnp.einsum("oi,bil->bol", p["w3"], h2) + p["b3"][None, :, None]
    h3 = _bn_ref(h3, p["bn3"])
    return jax.nn.relu(h3 + x)


def dcf_m_ref(current, voltage, params):
    c1 = bottleneck1d_ref(current, params["EncoderI1"])
    v1 = bottleneck1d_ref(voltage, params["EncoderV1"])
    c2 = bottleneck1d_ref(c1, params["EncoderI2"])
    v2 = bottleneck1d_ref(v1, params["EncoderV2"])
    return c1, v1, c2, v2


# ----------------------------------------------------------------------------
if __name__ == "__main__":
    key = jax.random.PRNGKey(0)
    k_cur, k_vol, k_par = jax.random.split(key, 3)

    B, C, L = 2, 5, 16  # num_cmg = 5 (module default), seq_len = 16
    current = jax.random.normal(k_cur, (B, C, L), jnp.float32)
    voltage = jax.random.normal(k_vol, (B, C, L), jnp.float32)

    names = ["EncoderI1", "EncoderV1", "EncoderI2", "EncoderV2"]
    pkeys = jax.random.split(k_par, 4)
    params = {n: init_bottleneck_params(k, C) for n, k in zip(names, pkeys)}

    # One-time packing (inference-static), outside the per-call path.
    wsq, w2, sh = pack_dcf_params(params, B)

    outs = dcf_m_forward(current, voltage, wsq, w2, sh)
    outs = jax.block_until_ready(outs)

    refs = dcf_m_ref(current, voltage, params)
    for o, r in zip(outs, refs):
        np.testing.assert_allclose(np.asarray(o), np.asarray(r),
                                   rtol=1e-4, atol=1e-4)

    print("KERNEL_OK")
</pallas_src>

<mosaic_0001>
module attributes {stable_mosaic.version = 11 : i64} {
  func.func @_dcf_kernel(%arg0: i32, %arg1: memref<24x128xf32, #tpu.memory_space<vmem>>, %arg2: memref<4x24x24xf32, #tpu.memory_space<vmem>>, %arg3: memref<2x72x24xf32, #tpu.memory_space<vmem>>, %arg4: memref<6x24x1xf32, #tpu.memory_space<vmem>>, %arg5: memref<24x128xf32, #tpu.memory_space<vmem>>, %arg6: memref<24x128xf32, #tpu.memory_space<vmem>>) attributes {dimension_semantics = [#tpu.dimension_semantics<arbitrary>], iteration_bounds = array<i64: 1>, scalar_prefetch = 0 : i64, scratch_operands = 0 : i64, tpu.core_type = #tpu.core_type<tc>, window_params = [{pipeline_mode = #tpu.pipeline_mode<synchronous>, transform_indices = @transform_0, window_bounds = array<i64: 24, 128>}, {pipeline_mode = #tpu.pipeline_mode<synchronous>, transform_indices = @transform_1, window_bounds = array<i64: 4, 24, 24>}, {pipeline_mode = #tpu.pipeline_mode<synchronous>, transform_indices = @transform_2, window_bounds = array<i64: 2, 72, 24>}, {pipeline_mode = #tpu.pipeline_mode<synchronous>, transform_indices = @transform_3, window_bounds = array<i64: 6, 24, 1>}, {pipeline_mode = #tpu.pipeline_mode<synchronous>, transform_indices = @transform_4, window_bounds = array<i64: 24, 128>}, {pipeline_mode = #tpu.pipeline_mode<synchronous>, transform_indices = @transform_5, window_bounds = array<i64: 24, 128>}]} {
    %0 = tpu.iota {dimensions = array<i32: 1>} : vector<1x128xi32>
    %c1_i32 = arith.constant 1 : i32
    %1 = vector.broadcast %c1_i32 : i32 to vector<1x128xi32>
    %2 = arith.cmpi sge, %0, %1 : vector<1x128xi32>
    %c16_i32 = arith.constant 16 : i32
    %3 = vector.broadcast %c16_i32 : i32 to vector<1x128xi32>
    %4 = arith.cmpi slt, %0, %3 : vector<1x128xi32>
    %5 = arith.andi %2, %4 : vector<1x128xi1>
    %6 = arith.extui %5 : vector<1x128xi1> to vector<1x128xi32>
    %7 = arith.sitofp %6 : vector<1x128xi32> to vector<1x128xf32>
    %c15_i32 = arith.constant 15 : i32
    %8 = vector.broadcast %c15_i32 : i32 to vector<1x128xi32>
    %9 = arith.cmpi slt, %0, %8 : vector<1x128xi32>
    %10 = arith.extui %9 : vector<1x128xi1> to vector<1x128xi32>
    %11 = arith.sitofp %10 : vector<1x128xi32> to vector<1x128xf32>
    %c0 = arith.constant 0 : index
    %c0_0 = arith.constant 0 : index
    %12 = vector.load %arg1[%c0, %c0_0] : memref<24x128xf32, #tpu.memory_space<vmem>>, vector<24x128xf32>
    %c0_1 = arith.constant 0 : index
    %c0_2 = arith.constant 0 : index
    %c0_3 = arith.constant 0 : index
    %13 = vector.load %arg2[%c0_1, %c0_2, %c0_3] : memref<4x24x24xf32, #tpu.memory_space<vmem>>, vector<1x24x24xf32>
    %14 = vector.shape_cast %13 : vector<1x24x24xf32> to vector<24x24xf32>
    %cst = arith.constant dense<0.000000e+00> : vector<24x128xf32>
    %15 = tpu.matmul %14, %12, %cst {dimension_numbers = #tpu.dot_dimension_numbers<[1], [0], [0], [1], [0, 0, 1, 1], [], []>} : vector<24x24xf32>, vector<24x128xf32>, vector<24x128xf32> -> vector<24x128xf32>
    %c0_4 = arith.constant 0 : index
    %c0_5 = arith.constant 0 : index
    %c0_6 = arith.constant 0 : index
    %16 = vector.load %arg4[%c0_4, %c0_5, %c0_6] : memref<6x24x1xf32, #tpu.memory_space<vmem>>, vector<1x24x1xf32>
    %17 = vector.shape_cast %16 : vector<1x24x1xf32> to vector<24x1xf32>
    %18 = vector.broadcast %17 : vector<24x1xf32> to vector<24x128xf32>
    %19 = arith.addf %15, %18 : vector<24x128xf32>
    %cst_7 = arith.constant 0.000000e+00 : f32
    %20 = vector.broadcast %cst_7 : f32 to vector<24x128xf32>
    %21 = arith.maximumf %19, %20 : vector<24x128xf32>
    %c0_8 = arith.constant 0 : index
    %c0_9 = arith.constant 0 : index
    %c0_10 = arith.constant 0 : index
    %22 = vector.load %arg3[%c0_8, %c0_9, %c0_10] : memref<2x72x24xf32, #tpu.memory_space<vmem>>, vector<1x72x24xf32>
    %23 = vector.shape_cast %22 : vector<1x72x24xf32> to vector<72x24xf32>
    %cst_11 = arith.constant dense<0.000000e+00> : vector<72x128xf32>
    %24 = tpu.matmul %23, %21, %cst_11 {dimension_numbers = #tpu.dot_dimension_numbers<[1], [0], [0], [1], [0, 0, 1, 1], [], []>} : vector<72x24xf32>, vector<24x128xf32>, vector<72x128xf32> -> vector<72x128xf32>
    %25 = vector.extract_strided_slice %24 {offsets = [0, 0], sizes = [24, 128], strides = [1, 1]} : vector<72x128xf32> to vector<24x128xf32>
    %26 = vector.extract_strided_slice %24 {offsets = [24, 0], sizes = [24, 128], strides = [1, 1]} : vector<72x128xf32> to vector<24x128xf32>
    %27 = vector.extract_strided_slice %24 {offsets = [48, 0], sizes = [24, 128], strides = [1, 1]} : vector<72x128xf32> to vector<24x128xf32>
    %c1_i32_12 = arith.constant 1 : i32
    %28 = tpu.dynamic_rotate %25 by %c1_i32_12 dim 1 : vector<24x128xf32>, i32 -> vector<24x128xf32>
    %29 = vector.broadcast %7 : vector<1x128xf32> to vector<24x128xf32>
    %30 = arith.mulf %28, %29 : vector<24x128xf32>
    %31 = arith.addf %30, %26 : vector<24x128xf32>
    %c127_i32 = arith.constant 127 : i32
    %32 = tpu.dynamic_rotate %27 by %c127_i32 dim 1 : vector<24x128xf32>, i32 -> vector<24x128xf32>
    %33 = vector.broadcast %11 : vector<1x128xf32> to vector<24x128xf32>
    %34 = arith.mulf %32, %33 : vector<24x128xf32>
    %35 = arith.addf %31, %34 : vector<24x128xf32>
    %c1 = arith.constant 1 : index
    %c0_13 = arith.constant 0 : index
    %c0_14 = arith.constant 0 : index
    %36 = vector.load %arg4[%c1, %c0_13, %c0_14] : memref<6x24x1xf32, #tpu.memory_space<vmem>>, vector<1x24x1xf32>
    %37 = vector.shape_cast %36 : vector<1x24x1xf32> to vector<24x1xf32>
    %38 = vector.broadcast %37 : vector<24x1xf32> to vector<24x128xf32>
    %39 = arith.addf %35, %38 : vector<24x128xf32>
    %cst_15 = arith.constant 0.000000e+00 : f32
    %40 = vector.broadcast %cst_15 : f32 to vector<24x128xf32>
    %41 = arith.maximumf %39, %40 : vector<24x128xf32>
    %c1_16 = arith.constant 1 : index
    %c0_17 = arith.constant 0 : index
    %c0_18 = arith.constant 0 : index
    %42 = vector.load %arg2[%c1_16, %c0_17, %c0_18] : memref<4x24x24xf32, #tpu.memory_space<vmem>>, vector<1x24x24xf32>
    %43 = vector.shape_cast %42 : vector<1x24x24xf32> to vector<24x24xf32>
    %cst_19 = arith.constant dense<0.000000e+00> : vector<24x128xf32>
    %44 = tpu.matmul %43, %41, %cst_19 {dimension_numbers = #tpu.dot_dimension_numbers<[1], [0], [0], [1], [0, 0, 1, 1], [], []>} : vector<24x24xf32>, vector<24x128xf32>, vector<24x128xf32> -> vector<24x128xf32>
    %c2 = arith.constant 2 : index
    %c0_20 = arith.constant 0 : index
    %c0_21 = arith.constant 0 : index
    %45 = vector.load %arg4[%c2, %c0_20, %c0_21] : memref<6x24x1xf32, #tpu.memory_space<vmem>>, vector<1x24x1xf32>
    %46 = vector.shape_cast %45 : vector<1x24x1xf32> to vector<24x1xf32>
    %47 = vector.broadcast %46 : vector<24x1xf32> to vector<24x128xf32>
    %48 = arith.addf %44, %47 : vector<24x128xf32>
    %49 = arith.addf %48, %12 : vector<24x128xf32>
    %cst_22 = arith.constant 0.000000e+00 : f32
    %50 = vector.broadcast %cst_22 : f32 to vector<24x128xf32>
    %51 = arith.maximumf %49, %50 : vector<24x128xf32>
    %c0_23 = arith.constant 0 : index
    %c0_24 = arith.constant 0 : index
    %52 = vector.load %arg5[%c0_23, %c0_24] : memref<24x128xf32, #tpu.memory_space<vmem>>, vector<24x128xf32>
    tpu.vector_store %arg5[%c0_23, %c0_24], %51 {strides = array<i32>} : memref<24x128xf32, #tpu.memory_space<vmem>>, vector<24x128xf32>,
    %c2_25 = arith.constant 2 : index
    %c0_26 = arith.constant 0 : index
    %c0_27 = arith.constant 0 : index
    %53 = vector.load %arg2[%c2_25, %c0_26, %c0_27] : memref<4x24x24xf32, #tpu.memory_space<vmem>>, vector<1x24x24xf32>
    %54 = vector.shape_cast %53 : vector<1x24x24xf32> to vector<24x24xf32>
    %cst_28 = arith.constant dense<0.000000e+00> : vector<24x128xf32>
    %55 = tpu.matmul %54, %51, %cst_28 {dimension_numbers = #tpu.dot_dimension_numbers<[1], [0], [0], [1], [0, 0, 1, 1], [], []>} : vector<24x24xf32>, vector<24x128xf32>, vector<24x128xf32> -> vector<24x128xf32>
    %c3 = arith.constant 3 : index
    %c0_29 = arith.constant 0 : index
    %c0_30 = arith.constant 0 : index
    %56 = vector.load %arg4[%c3, %c0_29, %c0_30] : memref<6x24x1xf32, #tpu.memory_space<vmem>>, vector<1x24x1xf32>
    %57 = vector.shape_cast %56 : vector<1x24x1xf32> to vector<24x1xf32>
    %58 = vector.broadcast %57 : vector<24x1xf32> to vector<24x128xf32>
    %59 = arith.addf %55, %58 : vector<24x128xf32>
    %cst_31 = arith.constant 0.000000e+00 : f32
    %60 = vector.broadcast %cst_31 : f32 to vector<24x128xf32>
    %61 = arith.maximumf %59, %60 : vector<24x128xf32>
    %c1_32 = arith.constant 1 : index
    %c0_33 = arith.constant 0 : index
    %c0_34 = arith.constant 0 : index
    %62 = vector.load %arg3[%c1_32, %c0_33, %c0_34] : memref<2x72x24xf32, #tpu.memory_space<vmem>>, vector<1x72x24xf32>
    %63 = vector.shape_cast %62 : vector<1x72x24xf32> to vector<72x24xf32>
    %cst_35 = arith.constant dense<0.000000e+00> : vector<72x128xf32>
    %64 = tpu.matmul %63, %61, %cst_35 {dimension_numbers = #tpu.dot_dimension_numbers<[1], [0], [0], [1], [0, 0, 1, 1], [], []>} : vector<72x24xf32>, vector<24x128xf32>, vector<72x128xf32> -> vector<72x128xf32>
    %65 = vector.extract_strided_slice %64 {offsets = [0, 0], sizes = [24, 128], strides = [1, 1]} : vector<72x128xf32> to vector<24x128xf32>
    %66 = vector.extract_strided_slice %64 {offsets = [24, 0], sizes = [24, 128], strides = [1, 1]} : vector<72x128xf32> to vector<24x128xf32>
    %67 = vector.extract_strided_slice %64 {offsets = [48, 0], sizes = [24, 128], strides = [1, 1]} : vector<72x128xf32> to vector<24x128xf32>
    %c1_i32_36 = arith.constant 1 : i32
    %68 = tpu.dynamic_rotate %65 by %c1_i32_36 dim 1 : vector<24x128xf32>, i32 -> vector<24x128xf32>
    %69 = vector.broadcast %7 : vector<1x128xf32> to vector<24x128xf32>
    %70 = arith.mulf %68, %69 : vector<24x128xf32>
    %71 = arith.addf %70, %66 : vector<24x128xf32>
    %c127_i32_37 = arith.constant 127 : i32
    %72 = tpu.dynamic_rotate %67 by %c127_i32_37 dim 1 : vector<24x128xf32>, i32 -> vector<24x128xf32>
    %73 = vector.broadcast %11 : vector<1x128xf32> to vector<24x128xf32>
    %74 = arith.mulf %72, %73 : vector<24x128xf32>
    %75 = arith.addf %71, %74 : vector<24x128xf32>
    %c4 = arith.constant 4 : index
    %c0_38 = arith.constant 0 : index
    %c0_39 = arith.constant 0 : index
    %76 = vector.load %arg4[%c4, %c0_38, %c0_39] : memref<6x24x1xf32, #tpu.memory_space<vmem>>, vector<1x24x1xf32>
    %77 = vector.shape_cast %76 : vector<1x24x1xf32> to vector<24x1xf32>
    %78 = vector.broadcast %77 : vector<24x1xf32> to vector<24x128xf32>
    %79 = arith.addf %75, %78 : vector<24x128xf32>
    %cst_40 = arith.constant 0.000000e+00 : f32
    %80 = vector.broadcast %cst_40 : f32 to vector<24x128xf32>
    %81 = arith.maximumf %79, %80 : vector<24x128xf32>
    %c3_41 = arith.constant 3 : index
    %c0_42 = arith.constant 0 : index
    %c0_43 = arith.constant 0 : index
    %82 = vector.load %arg2[%c3_41, %c0_42, %c0_43] : memref<4x24x24xf32, #tpu.memory_space<vmem>>, vector<1x24x24xf32>
    %83 = vector.shape_cast %82 : vector<1x24x24xf32> to vector<24x24xf32>
    %cst_44 = arith.constant dense<0.000000e+00> : vector<24x128xf32>
    %84 = tpu.matmul %83, %81, %cst_44 {dimension_numbers = #tpu.dot_dimension_numbers<[1], [0], [0], [1], [0, 0, 1, 1], [], []>} : vector<24x24xf32>, vector<24x128xf32>, vector<24x128xf32> -> vector<24x128xf32>
    %c5 = arith.constant 5 : index
    %c0_45 = arith.constant 0 : index
    %c0_46 = arith.constant 0 : index
    %85 = vector.load %arg4[%c5, %c0_45, %c0_46] : memref<6x24x1xf32, #tpu.memory_space<vmem>>, vector<1x24x1xf32>
    %86 = vector.shape_cast %85 : vector<1x24x1xf32> to vector<24x1xf32>
    %87 = vector.broadcast %86 : vector<24x1xf32> to vector<24x128xf32>
    %88 = arith.addf %84, %87 : vector<24x128xf32>
    %89 = arith.addf %88, %51 : vector<24x128xf32>
    %cst_47 = arith.constant 0.000000e+00 : f32
    %90 = vector.broadcast %cst_47 : f32 to vector<24x128xf32>
    %91 = arith.maximumf %89, %90 : vector<24x128xf32>
    %c0_48 = arith.constant 0 : index
    %c0_49 = arith.constant 0 : index
    %92 = vector.load %arg6[%c0_48, %c0_49] : memref<24x128xf32, #tpu.memory_space<vmem>>, vector<24x128xf32>
    tpu.vector_store %arg6[%c0_48, %c0_49], %91 {strides = array<i32>} : memref<24x128xf32, #tpu.memory_space<vmem>>, vector<24x128xf32>,
    return
  }
  func.func @transform_0(%arg0: i32) -> (i32, i32) {
    %c0_i32 = arith.constant 0 : i32
    %c0_i32_0 = arith.constant 0 : i32
    %c0_i32_1 = arith.constant 0 : i32
    return %c0_i32, %c0_i32_0 : i32, i32
  }
  func.func @transform_1(%arg0: i32) -> (i32, i32, i32) {
    %c0_i32 = arith.constant 0 : i32
    %c0_i32_0 = arith.constant 0 : i32
    %c0_i32_1 = arith.constant 0 : i32
    %c0_i32_2 = arith.constant 0 : i32
    return %c0_i32, %c0_i32_0, %c0_i32_1 : i32, i32, i32
  }
  func.func @transform_2(%arg0: i32) -> (i32, i32, i32) {
    %c0_i32 = arith.constant 0 : i32
    %c0_i32_0 = arith.constant 0 : i32
    %c0_i32_1 = arith.constant 0 : i32
    %c0_i32_2 = arith.constant 0 : i32
    return %c0_i32, %c0_i32_0, %c0_i32_1 : i32, i32, i32
  }
  func.func @transform_3(%arg0: i32) -> (i32, i32, i32) {
    %c0_i32 = arith.constant 0 : i32
    %c0_i32_0 = arith.constant 0 : i32
    %c0_i32_1 = arith.constant 0 : i32
    %c0_i32_2 = arith.constant 0 : i32
    return %c0_i32, %c0_i32_0, %c0_i32_1 : i32, i32, i32
  }
  func.func @transform_4(%arg0: i32) -> (i32, i32) {
    %c0_i32 = arith.constant 0 : i32
    %c0_i32_0 = arith.constant 0 : i32
    %c0_i32_1 = arith.constant 0 : i32
    return %c0_i32, %c0_i32_0 : i32, i32
  }
  func.func @transform_5(%arg0: i32) -> (i32, i32) {
    %c0_i32 = arith.constant 0 : i32
    %c0_i32_0 = arith.constant 0 : i32
    %c0_i32_1 = arith.constant 0 : i32
    return %c0_i32, %c0_i32_0 : i32, i32
  }
}

</mosaic_0001>

<llo_original>
// kernel: squeeze.4
$region0: #{squeeze.4}
  %s0 = inlined_call_operand.vmem [shape: f32[10,16], index: 0, kind: input, shape index: {}]
  %s1 = inlined_call_operand.vmem [shape: f32[2,5,16], index: 1, kind: output, shape index: {}]
  %v2 = vld [vmem:[%s0] sm:$0xff]
  %vm3 = vcmask 130048
  %4 = vst.msk [vmem:[%s1] sm:$0x1f] %vm3, %v2
  %s5 = scalar_lea.vmem %s1, 3
  %6 = vst.msk [vmem:[%s5] sm:$0xe0] %vm3, %v2
  %s7 = scalar_lea.vmem %s0, 8
  %v8 = vld [vmem:[%s7] sm:$0x3]
  %vm9 = vcmask 130048
  %s10 = scalar_lea.vmem %s1, 11
  %11 = vst.msk [vmem:[%s10] sm:$0x3] %vm9, %v8

// kernel: dcf_m_forward.1
$region0: #{dcf_m_forward.1}
  #allocation0 [shape = 'u32[]', space=smem, size = 0x4, offset = 0x4, fixed_abs, tag = 'smem constant byte address 0x4 - core index']
  #allocation1 [shape = 'u32[72,128]{1,0:T(1,128)}', space=vmem, size = 0x9000, scoped, tag = 'internal scratch']
  %s0 = inlined_call_operand.vmem [shape: f32[24,128], index: 0, kind: input, shape index: {}]
  %s1 = inlined_call_operand.vmem [shape: f32[4,24,24], index: 1, kind: input, shape index: {}]
  %s2 = inlined_call_operand.vmem [shape: f32[2,72,24], index: 2, kind: input, shape index: {}]
  %s3 = inlined_call_operand.vmem [shape: f32[6,24,1], index: 3, kind: input, shape index: {}]
  %s4 = inlined_call_operand.vmem [shape: f32[24,128], index: 4, kind: output, shape index: {0}]
  %s5 = inlined_call_operand.vmem [shape: f32[24,128], index: 5, kind: output, shape index: {1}]
  %6 = xla_tuple %s4, %s5
  %s7 = sld [smem:[#allocation0]]
  $region34: #{dcf_m_forward.1} parent=0
    _
  %s9 = ssub.s32 1, %s7
  %s10 = scalar_select 0, %s9, %s7
  // Predicated region
  $region2: #{dcf_m_forward.1} parent=0 // pred_check
    _
  $region3: #{dcf_m_forward.1} parent=0 // pred_check_branch
    %12 = sbr.rel (0) target = $region5
  $region4: #{dcf_m_forward.1} parent=0 // pred_region
    _
  $region5: #{dcf_m_forward.1} parent=0 // pred_fallthru
    _
  // Predicated region
  $region6: #{dcf_m_forward.1} parent=0 // pred_check
    _
  $region7: #{dcf_m_forward.1} parent=0 // pred_check_branch
    %14 = sbr.rel (0) target = $region9
  $region8: #{dcf_m_forward.1} parent=0 // pred_region
    _
  $region9: #{dcf_m_forward.1} parent=0 // pred_fallthru
    _
  // Predicated region
  $region10: #{dcf_m_forward.1} parent=0 // pred_check
    _
  $region11: #{dcf_m_forward.1} parent=0 // pred_check_branch
    %16 = sbr.rel (0) target = $region13
  $region12: #{dcf_m_forward.1} parent=0 // pred_region
    _
  $region13: #{dcf_m_forward.1} parent=0 // pred_fallthru
    _
  // Predicated region
  $region14: #{dcf_m_forward.1} parent=0 // pred_check
    _
  $region15: #{dcf_m_forward.1} parent=0 // pred_check_branch
    %18 = sbr.rel (0) target = $region17
  $region16: #{dcf_m_forward.1} parent=0 // pred_region
    _
  $region17: #{dcf_m_forward.1} parent=0 // pred_fallthru
    _
  %v19 = vlaneseq
  %v20 = vand.u32 %v19, 127
  %vm21 = vcmp.ge.s32.totalorder %v20, 1
  %vm22 = vcmp.lt.s32.totalorder %v20, 16
  %vm23 = vmand %vm21, %vm22
  %v24 = vsel %vm23, 1, 0
  %v25 = vcvt.s32.f32 %v24
  %vm26 = vcmp.lt.s32.totalorder %v20, 15
  %v27 = vsel %vm26, 1, 0
  %v28 = vcvt.s32.f32 %v27
  %v29 = vld [vmem:[%s0] sm:$0xff]
  %v30 = vld [vmem:[%s0 + $0x8] sm:$0xff]
  %v31 = vld [vmem:[%s0 + $0x10] sm:$0xff]
  %v32 = vld [vmem:[%s1] sm:$0xff]
  %v33 = vld [vmem:[%s1 + $0x8] sm:$0xff]
  %v34 = vld [vmem:[%s1 + $0x10] sm:$0xff]
  %v35 = vld [vmem:[%s3] sm:$0xff]
  %v36 = vld [vmem:[%s3 + $0x8] sm:$0xff]
  %v37 = vld [vmem:[%s3 + $0x10] sm:$0xff]
  %39 = vset.pattern.permute.xlu0 0
  %40 = vperm.xlu0 %39, %v35
  %v41 = vpop.permute.xlu0 %40
  %44 = vset.pattern.permute.xlu0 0
  %45 = vperm.xlu0 %44, %v36
  %v46 = vpop.permute.xlu0 %45
  %49 = vset.pattern.permute.xlu0 0
  %50 = vperm.xlu0 %49, %v37
  %v51 = vpop.permute.xlu0 %50
  %vm53 = vcmask 195584
  %v55 = vsel %vm53, %v32, 0
  %v58 = vsel %vm53, %v33, 0
  %v61 = vsel %vm53, %v34, 0
  %63 = vmatpush.msra.mxu0 0.0
  %64 = vmatpush.msra.mxu0 0.0
  %65 = vmatpush.msra.mxu0 0.0
  %66 = vmatpush.msra.mxu0 0.0
  %67 = vmatpush.msra.mxu0 0.0
  %68 = vmatpush.msra.mxu0 0.0
  %69 = vmatpush.msra.mxu0 0.0
  %70 = vmatpush.msra.mxu0 0.0
  %71 = vmatpush.msra.mxu0 0.0
  %72 = vmatpush.msra.mxu0 0.0
  %73 = vmatpush.msra.mxu0 0.0
  %74 = vmatpush.msra.mxu0 0.0
  %75 = vmatpush.msra.mxu0 0.0
  %76 = vmatpush.msra.mxu0 %v31
  %77 = vmatpush.msra.mxu0 %v30
  %78 = vmatpush.msra.mxu0 %v29
  %79 = vmatmul.f32.gmra.mxu0 %v55
  %v80 = vpop.f32.mrf.mxu0
  %v81 = vadd.f32 %v41, %v80
  %82 = vmatmul.f32.gmra.mxu0 %v58
  %v83 = vpop.f32.mrf.mxu0
  %v84 = vadd.f32 %v46, %v83
  %85 = vmatmul.f32.gmra.mxu0 %v61
  %v86 = vpop.f32.mrf.mxu0
  %v87 = vadd.f32 %v51, %v86
  %88 = vdwg.mxu0
  %v89 = vmax.f32 %v81, 0.0
  %v90 = vmax.f32 %v84, 0.0
  %v91 = vmax.f32 %v87, 0.0
  %v92 = vld [vmem:[%s2] sm:$0xff]
  %v93 = vld [vmem:[%s2 + $0x8] sm:$0xff]
  %v94 = vld [vmem:[%s2 + $0x10] sm:$0xff]
  %v95 = vld [vmem:[%s2 + $0x18] sm:$0xff]
  %v96 = vld [vmem:[%s2 + $0x20] sm:$0xff]
  %v97 = vld [vmem:[%s2 + $0x28] sm:$0xff]
  %v98 = vld [vmem:[%s2 + $0x30] sm:$0xff]
  %v99 = vld [vmem:[%s2 + $0x38] sm:$0xff]
  %v100 = vld [vmem:[%s2 + $0x40] sm:$0xff]
  %v102 = vsel %vm53, %v92, 0
  %v105 = vsel %vm53, %v93, 0
  %v108 = vsel %vm53, %v94, 0
  %v111 = vsel %vm53, %v95, 0
  %v114 = vsel %vm53, %v96, 0
  %v117 = vsel %vm53, %v97, 0
  %v120 = vsel %vm53, %v98, 0
  %v123 = vsel %vm53, %v99, 0
  %v126 = vsel %vm53, %v100, 0
  %128 = vmatpush.msra.mxu0 0.0
  %129 = vmatpush.msra.mxu0 0.0
  %130 = vmatpush.msra.mxu0 0.0
  %131 = vmatpush.msra.mxu0 0.0
  %132 = vmatpush.msra.mxu0 0.0
  %133 = vmatpush.msra.mxu0 0.0
  %134 = vmatpush.msra.mxu0 0.0
  %135 = vmatpush.msra.mxu0 0.0
  %136 = vmatpush.msra.mxu0 0.0
  %137 = vmatpush.msra.mxu0 0.0
  %138 = vmatpush.msra.mxu0 0.0
  %139 = vmatpush.msra.mxu0 0.0
  %140 = vmatpush.msra.mxu0 0.0
  %141 = vmatpush.msra.mxu0 %v91
  %142 = vmatpush.msra.mxu0 %v90
  %143 = vmatpush.msra.mxu0 %v89
  %144 = vmatmul.f32.gmra.mxu0 %v102
  %v145 = vpop.f32.mrf.mxu0
  %v146 = vadd.f32 0.0, %v145
  %147 = vmatmul.f32.gmra.mxu0 %v105
  %v148 = vpop.f32.mrf.mxu0
  %v149 = vadd.f32 0.0, %v148
  %150 = vmatmul.f32.gmra.mxu0 %v108
  %v151 = vpop.f32.mrf.mxu0
  %v152 = vadd.f32 0.0, %v151
  %153 = vmatmul.f32.gmra.mxu0 %v111
  %v154 = vpop.f32.mrf.mxu0
  %v155 = vadd.f32 0.0, %v154
  %156 = vmatmul.f32.gmra.mxu0 %v114
  %v157 = vpop.f32.mrf.mxu0
  %v158 = vadd.f32 0.0, %v157
  %159 = vmatmul.f32.gmra.mxu0 %v117
  %v160 = vpop.f32.mrf.mxu0
  %v161 = vadd.f32 0.0, %v160
  %162 = vmatmul.f32.gmra.mxu0 %v120
  %v163 = vpop.f32.mrf.mxu0
  %v164 = vadd.f32 0.0, %v163
  %165 = vmatmul.f32.gmra.mxu0 %v123
  %v166 = vpop.f32.mrf.mxu0
  %v167 = vadd.f32 0.0, %v166
  %168 = vmatmul.f32.gmra.mxu0 %v126
  %v169 = vpop.f32.mrf.mxu0
  %v170 = vadd.f32 0.0, %v169
  %171 = vdwg.mxu0
  %172 = vrot.lane.b32.xlu0 %v146, 1
  %v173 = vpop.permute.xlu0 %172
  %174 = vrot.lane.b32.xlu0 %v149, 1
  %v175 = vpop.permute.xlu0 %174
  %176 = vrot.lane.b32.xlu0 %v152, 1
  %v177 = vpop.permute.xlu0 %176
  %v178 = vmul.f32 %v173, %v25
  %v179 = vmul.f32 %v175, %v25
  %v180 = vmul.f32 %v177, %v25
  %v181 = vadd.f32 %v178, %v155
  %v182 = vadd.f32 %v179, %v158
  %v183 = vadd.f32 %v180, %v161
  %184 = vrot.lane.b32.xlu0 %v164, 127
  %v185 = vpop.permute.xlu0 %184
  %186 = vrot.lane.b32.xlu0 %v167, 127
  %v187 = vpop.permute.xlu0 %186
  %188 = vrot.lane.b32.xlu0 %v170, 127
  %v189 = vpop.permute.xlu0 %188
  %v190 = vmul.f32 %v185, %v28
  %v191 = vmul.f32 %v187, %v28
  %v192 = vmul.f32 %v189, %v28
  %v193 = vadd.f32 %v181, %v190
  %v194 = vadd.f32 %v182, %v191
  %v195 = vadd.f32 %v183, %v192
  %s196 = scalar_lea.vmem %s3, 24
  %v197 = vld [vmem:[%s196] sm:$0xff]
  %v198 = vld [vmem:[%s196 + $0x8] sm:$0xff]
  %v199 = vld [vmem:[%s196 + $0x10] sm:$0xff]
  %201 = vset.pattern.permute.xlu0 0
  %202 = vperm.xlu0 %201, %v197
  %v203 = vpop.permute.xlu0 %202
  %206 = vset.pattern.permute.xlu0 0
  %207 = vperm.xlu0 %206, %v198
  %v208 = vpop.permute.xlu0 %207
  %211 = vset.pattern.permute.xlu0 0
  %212 = vperm.xlu0 %211, %v199
  %v213 = vpop.permute.xlu0 %212
  %v215 = vadd.f32 %v193, %v203
  %v216 = vadd.f32 %v194, %v208
  %v217 = vadd.f32 %v195, %v213
  %v218 = vmax.f32 %v215, 0.0
  %v219 = vmax.f32 %v216, 0.0
  %v220 = vmax.f32 %v217, 0.0
  %s221 = scalar_lea.vmem %s1, 24
  %v222 = vld [vmem:[%s221] sm:$0xff]
  %v223 = vld [vmem:[%s221 + $0x8] sm:$0xff]
  %v224 = vld [vmem:[%s221 + $0x10] sm:$0xff]
  %s225 = scalar_lea.vmem %s3, 48
  %v226 = vld [vmem:[%s225] sm:$0xff]
  %v227 = vld [vmem:[%s225 + $0x8] sm:$0xff]
  %v228 = vld [vmem:[%s225 + $0x10] sm:$0xff]
  %230 = vset.pattern.permute.xlu0 0
  %231 = vperm.xlu0 %230, %v226
  %v232 = vpop.permute.xlu0 %231
  %235 = vset.pattern.permute.xlu0 0
  %236 = vperm.xlu0 %235, %v227
  %v237 = vpop.permute.xlu0 %236
  %240 = vset.pattern.permute.xlu0 0
  %241 = vperm.xlu0 %240, %v228
  %v242 = vpop.permute.xlu0 %241
  %v245 = vsel %vm53, %v222, 0
  %v248 = vsel %vm53, %v223, 0
  %v251 = vsel %vm53, %v224, 0
  %253 = vmatpush.msra.mxu0 0.0
  %254 = vmatpush.msra.mxu0 0.0
  %255 = vmatpush.msra.mxu0 0.0
  %256 = vmatpush.msra.mxu0 0.0
  %257 = vmatpush.msra.mxu0 0.0
  %258 = vmatpush.msra.mxu0 0.0
  %259 = vmatpush.msra.mxu0 0.0
  %260 = vmatpush.msra.mxu0 0.0
  %261 = vmatpush.msra.mxu0 0.0
  %262 = vmatpush.msra.mxu0 0.0
  %263 = vmatpush.msra.mxu0 0.0
  %264 = vmatpush.msra.mxu0 0.0
  %265 = vmatpush.msra.mxu0 0.0
  %266 = vmatpush.msra.mxu0 %v220
  %267 = vmatpush.msra.mxu0 %v219
  %268 = vmatpush.msra.mxu0 %v218
  %269 = vmatmul.f32.gmra.mxu0 %v245
  %v270 = vpop.f32.mrf.mxu0
  %v271 = vadd.f32 %v232, %v270
  %272 = vmatmul.f32.gmra.mxu0 %v248
  %v273 = vpop.f32.mrf.mxu0
  %v274 = vadd.f32 %v237, %v273
  %275 = vmatmul.f32.gmra.mxu0 %v251
  %v276 = vpop.f32.mrf.mxu0
  %v277 = vadd.f32 %v242, %v276
  %278 = vdwg.mxu0
  %v279 = vadd.f32 %v271, %v29
  %v280 = vadd.f32 %v274, %v30
  %v281 = vadd.f32 %v277, %v31
  %v282 = vmax.f32 %v279, 0.0
  %v283 = vmax.f32 %v280, 0.0
  %v284 = vmax.f32 %v281, 0.0
  %285 = vst [vmem:[%s4] sm:$0xff] %v282
  %286 = vst [vmem:[%s4 + $0x8] sm:$0xff] %v283
  %287 = vst [vmem:[%s4 + $0x10] sm:$0xff] %v284
  %s288 = scalar_lea.vmem %s1, 48
  %v289 = vld [vmem:[%s288] sm:$0xff]
  %v290 = vld [vmem:[%s288 + $0x8] sm:$0xff]
  %v291 = vld [vmem:[%s288 + $0x10] sm:$0xff]
  %s292 = scalar_lea.vmem %s3, 72
  %v293 = vld [vmem:[%s292] sm:$0xff]
  %v294 = vld [vmem:[%s292 + $0x8] sm:$0xff]
  %v295 = vld [vmem:[%s292 + $0x10] sm:$0xff]
  %297 = vset.pattern.permute.xlu0 0
  %298 = vperm.xlu0 %297, %v293
  %v299 = vpop.permute.xlu0 %298
  %302 = vset.pattern.permute.xlu0 0
  %303 = vperm.xlu0 %302, %v294
  %v304 = vpop.permute.xlu0 %303
  %307 = vset.pattern.permute.xlu0 0
  %308 = vperm.xlu0 %307, %v295
  %v309 = vpop.permute.xlu0 %308
  %v312 = vsel %vm53, %v289, 0
  %v315 = vsel %vm53, %v290, 0
  %v318 = vsel %vm53, %v291, 0
  %320 = vmatpush.msra.mxu0 0.0
  %321 = vmatpush.msra.mxu0 0.0
  %322 = vmatpush.msra.mxu0 0.0
  %323 = vmatpush.msra.mxu0 0.0
  %324 = vmatpush.msra.mxu0 0.0
  %325 = vmatpush.msra.mxu0 0.0
  %326 = vmatpush.msra.mxu0 0.0
  %327 = vmatpush.msra.mxu0 0.0
  %328 = vmatpush.msra.mxu0 0.0
  %329 = vmatpush.msra.mxu0 0.0
  %330 = vmatpush.msra.mxu0 0.0
  %331 = vmatpush.msra.mxu0 0.0
  %332 = vmatpush.msra.mxu0 0.0
  %333 = vmatpush.msra.mxu0 %v284
  %334 = vmatpush.msra.mxu0 %v283
  %335 = vmatpush.msra.mxu0 %v282
  %336 = vmatmul.f32.gmra.mxu0 %v312
  %v337 = vpop.f32.mrf.mxu0
  %v338 = vadd.f32 %v299, %v337
  %339 = vmatmul.f32.gmra.mxu0 %v315
  %v340 = vpop.f32.mrf.mxu0
  %v341 = vadd.f32 %v304, %v340
  %342 = vmatmul.f32.gmra.mxu0 %v318
  %v343 = vpop.f32.mrf.mxu0
  %v344 = vadd.f32 %v309, %v343
  %345 = vdwg.mxu0
  %v346 = vmax.f32 %v338, 0.0
  %v347 = vmax.f32 %v341, 0.0
  %v348 = vmax.f32 %v344, 0.0
  %s349 = scalar_lea.vmem %s2, 72
  %v350 = vld [vmem:[%s349] sm:$0xff]
  %v351 = vld [vmem:[%s349 + $0x8] sm:$0xff]
  %v352 = vld [vmem:[%s349 + $0x10] sm:$0xff]
  %v353 = vld [vmem:[%s349 + $0x18] sm:$0xff]
  %v354 = vld [vmem:[%s349 + $0x20] sm:$0xff]
  %v355 = vld [vmem:[%s349 + $0x28] sm:$0xff]
  %v356 = vld [vmem:[%s349 + $0x30] sm:$0xff]
  %v357 = vld [vmem:[%s349 + $0x38] sm:$0xff]
  %v358 = vld [vmem:[%s349 + $0x40] sm:$0xff]
  %v360 = vsel %vm53, %v350, 0
  %v363 = vsel %vm53, %v351, 0
  %v366 = vsel %vm53, %v352, 0
  %v369 = vsel %vm53, %v353, 0
  %v372 = vsel %vm53, %v354, 0
  %v375 = vsel %vm53, %v355, 0
  %v378 = vsel %vm53, %v356, 0
  %v381 = vsel %vm53, %v357, 0
  %v384 = vsel %vm53, %v358, 0
  %386 = vmatpush.msra.mxu0 0.0
  %387 = vmatpush.msra.mxu0 0.0
  %388 = vmatpush.msra.mxu0 0.0
  %389 = vmatpush.msra.mxu0 0.0
  %390 = vmatpush.msra.mxu0 0.0
  %391 = vmatpush.msra.mxu0 0.0
  %392 = vmatpush.msra.mxu0 0.0
  %393 = vmatpush.msra.mxu0 0.0
  %394 = vmatpush.msra.mxu0 0.0
  %395 = vmatpush.msra.mxu0 0.0
  %396 = vmatpush.msra.mxu0 0.0
  %397 = vmatpush.msra.mxu0 0.0
  %398 = vmatpush.msra.mxu0 0.0
  %399 = vmatpush.msra.mxu0 %v348
  %400 = vmatpush.msra.mxu0 %v347
  %401 = vmatpush.msra.mxu0 %v346
  %402 = vmatmul.f32.gmra.mxu0 %v360
  %v403 = vpop.f32.mrf.mxu0
  %v404 = vadd.f32 0.0, %v403
  %405 = vmatmul.f32.gmra.mxu0 %v363
  %v406 = vpop.f32.mrf.mxu0
  %v407 = vadd.f32 0.0, %v406
  %408 = vmatmul.f32.gmra.mxu0 %v366
  %v409 = vpop.f32.mrf.mxu0
  %v410 = vadd.f32 0.0, %v409
  %411 = vmatmul.f32.gmra.mxu0 %v369
  %v412 = vpop.f32.mrf.mxu0
  %v413 = vadd.f32 0.0, %v412
  %414 = vmatmul.f32.gmra.mxu0 %v372
  %v415 = vpop.f32.mrf.mxu0
  %v416 = vadd.f32 0.0, %v415
  %417 = vmatmul.f32.gmra.mxu0 %v375
  %v418 = vpop.f32.mrf.mxu0
  %v419 = vadd.f32 0.0, %v418
  %420 = vmatmul.f32.gmra.mxu0 %v378
  %v421 = vpop.f32.mrf.mxu0
  %v422 = vadd.f32 0.0, %v421
  %423 = vmatmul.f32.gmra.mxu0 %v381
  %v424 = vpop.f32.mrf.mxu0
  %v425 = vadd.f32 0.0, %v424
  %426 = vmatmul.f32.gmra.mxu0 %v384
  %v427 = vpop.f32.mrf.mxu0
  %v428 = vadd.f32 0.0, %v427
  %429 = vdwg.mxu0
  %430 = vrot.lane.b32.xlu0 %v404, 1
  %v431 = vpop.permute.xlu0 %430
  %432 = vrot.lane.b32.xlu0 %v407, 1
  %v433 = vpop.permute.xlu0 %432
  %434 = vrot.lane.b32.xlu0 %v410, 1
  %v435 = vpop.permute.xlu0 %434
  %v436 = vmul.f32 %v431, %v25
  %v437 = vmul.f32 %v433, %v25
  %v438 = vmul.f32 %v435, %v25
  %v439 = vadd.f32 %v436, %v413
  %v440 = vadd.f32 %v437, %v416
  %v441 = vadd.f32 %v438, %v419
  %442 = vrot.lane.b32.xlu0 %v422, 127
  %v443 = vpop.permute.xlu0 %442
  %444 = vrot.lane.b32.xlu0 %v425, 127
  %v445 = vpop.permute.xlu0 %444
  %446 = vrot.lane.b32.xlu0 %v428, 127
  %v447 = vpop.permute.xlu0 %446
  %v448 = vmul.f32 %v443, %v28
  %v449 = vmul.f32 %v445, %v28
  %v450 = vmul.f32 %v447, %v28
  %v451 = vadd.f32 %v439, %v448
  %v452 = vadd.f32 %v440, %v449
  %v453 = vadd.f32 %v441, %v450
  %s454 = scalar_lea.vmem %s3, 96
  %v455 = vld [vmem:[%s454] sm:$0xff]
  %v456 = vld [vmem:[%s454 + $0x8] sm:$0xff]
  %v457 = vld [vmem:[%s454 + $0x10] sm:$0xff]
  %459 = vset.pattern.permute.xlu0 0
  %460 = vperm.xlu0 %459, %v455
  %v461 = vpop.permute.xlu0 %460
  %464 = vset.pattern.permute.xlu0 0
  %465 = vperm.xlu0 %464, %v456
  %v466 = vpop.permute.xlu0 %465
  %469 = vset.pattern.permute.xlu0 0
  %470 = vperm.xlu0 %469, %v457
  %v471 = vpop.permute.xlu0 %470
  %v473 = vadd.f32 %v451, %v461
  %v474 = vadd.f32 %v452, %v466
  %v475 = vadd.f32 %v453, %v471
  %v476 = vmax.f32 %v473, 0.0
  %v477 = vmax.f32 %v474, 0.0
  %v478 = vmax.f32 %v475, 0.0
  %s479 = scalar_lea.vmem %s1, 72
  %v480 = vld [vmem:[%s479] sm:$0xff]
  %v481 = vld [vmem:[%s479 + $0x8] sm:$0xff]
  %v482 = vld [vmem:[%s479 + $0x10] sm:$0xff]
  %s483 = scalar_lea.vmem %s3, 120
  %v484 = vld [vmem:[%s483] sm:$0xff]
  %v485 = vld [vmem:[%s483 + $0x8] sm:$0xff]
  %v486 = vld [vmem:[%s483 + $0x10] sm:$0xff]
  %488 = vset.pattern.permute.xlu0 0
  %489 = vperm.xlu0 %488, %v484
  %v490 = vpop.permute.xlu0 %489
  %493 = vset.pattern.permute.xlu0 0
  %494 = vperm.xlu0 %493, %v485
  %v495 = vpop.permute.xlu0 %494
  %498 = vset.pattern.permute.xlu0 0
  %499 = vperm.xlu0 %498, %v486
  %v500 = vpop.permute.xlu0 %499
  %v503 = vsel %vm53, %v480, 0
  %v506 = vsel %vm53, %v481, 0
  %v509 = vsel %vm53, %v482, 0
  %511 = vmatpush.msra.mxu0 0.0
  %512 = vmatpush.msra.mxu0 0.0
  %513 = vmatpush.msra.mxu0 0.0
  %514 = vmatpush.msra.mxu0 0.0
  %515 = vmatpush.msra.mxu0 0.0
  %516 = vmatpush.msra.mxu0 0.0
  %517 = vmatpush.msra.mxu0 0.0
  %518 = vmatpush.msra.mxu0 0.0
  %519 = vmatpush.msra.mxu0 0.0
  %520 = vmatpush.msra.mxu0 0.0
  %521 = vmatpush.msra.mxu0 0.0
  %522 = vmatpush.msra.mxu0 0.0
  %523 = vmatpush.msra.mxu0 0.0
  %524 = vmatpush.msra.mxu0 %v478
  %525 = vmatpush.msra.mxu0 %v477
  %526 = vmatpush.msra.mxu0 %v476
  %527 = vmatmul.f32.gmra.mxu0 %v503
  %v528 = vpop.f32.mrf.mxu0
  %v529 = vadd.f32 %v490, %v528
  %530 = vmatmul.f32.gmra.mxu0 %v506
  %v531 = vpop.f32.mrf.mxu0
  %v532 = vadd.f32 %v495, %v531
  %533 = vmatmul.f32.gmra.mxu0 %v509
  %v534 = vpop.f32.mrf.mxu0
  %v535 = vadd.f32 %v500, %v534
  %536 = vdwg.mxu0
  %v537 = vadd.f32 %v529, %v282
  %v538 = vadd.f32 %v532, %v283
  %v539 = vadd.f32 %v535, %v284
  %v540 = vmax.f32 %v537, 0.0
  %v541 = vmax.f32 %v538, 0.0
  %v542 = vmax.f32 %v539, 0.0
  %543 = vst [vmem:[%s5] sm:$0xff] %v540
  %544 = vst [vmem:[%s5 + $0x8] sm:$0xff] %v541
  %545 = vst [vmem:[%s5 + $0x10] sm:$0xff] %v542
  // Predicated region
  $region18: #{dcf_m_forward.1} parent=0 // pred_check
    _
  $region19: #{dcf_m_forward.1} parent=0 // pred_check_branch
    %547 = sbr.rel (0) target = $region21
  $region20: #{dcf_m_forward.1} parent=0 // pred_region
    _
  $region21: #{dcf_m_forward.1} parent=0 // pred_fallthru
    _
  // Predicated region
  $region22: #{dcf_m_forward.1} parent=0 // pred_check
    _
  $region23: #{dcf_m_forward.1} parent=0 // pred_check_branch
    %549 = sbr.rel (0) target = $region25
  $region24: #{dcf_m_forward.1} parent=0 // pred_region
    _
  $region25: #{dcf_m_forward.1} parent=0 // pred_fallthru
    _
  // Predicated region
  $region26: #{dcf_m_forward.1} parent=0 // pred_check
    _
  $region27: #{dcf_m_forward.1} parent=0 // pred_check_branch
    %551 = sbr.rel (0) target = $region29
  $region28: #{dcf_m_forward.1} parent=0 // pred_region
    _
  $region29: #{dcf_m_forward.1} parent=0 // pred_fallthru
    _
  // Predicated region
  $region30: #{dcf_m_forward.1} parent=0 // pred_check
    _
  $region31: #{dcf_m_forward.1} parent=0 // pred_check_branch
    %553 = sbr.rel (0) target = $region33
  $region32: #{dcf_m_forward.1} parent=0 // pred_region
    _
  $region33: #{dcf_m_forward.1} parent=0 // pred_fallthru
    _

</llo_original>
